<compile_context>
chip_gen: v7x
topology: tpu7x:2x2x1
jax: 0.10.0
libtpu: 0.0.40
codegen_flags: <defaults>
</compile_context>

<pallas_src>
import jax
import jax.numpy as jnp
from jax.experimental import pallas as pl
from jax.experimental.pallas import tpu as pltpu


def _round_up(n, m):
    return ((n + m - 1) // m) * m


def mine_kernel(xy_ref, w1_ref, b1_ref, w2_ref, b2_ref,
                w3_ref, b3_ref, w4_ref, b4_ref, o_ref):
    # xy_ref: [2, tile]   (row 0 = x, row 1 = y), lane-dense along the batch.
    x_row = xy_ref[0:1, :]                      # [1, tile]
    y_row = xy_ref[1:2, :]                      # [1, tile]

    # Layer 1 (in=2): VPU broadcast FMAs, skip the degenerate K=2 MXU matmul.
    h = w1_ref[:, 0:1] * x_row + w1_ref[:, 1:2] * y_row + b1_ref[...]   # [128, tile]
    h = jnp.maximum(h, 0.0)

    # Layers 2 & 3 (128x128): MXU, batch stays lane-dense (N = tile).
    h = jnp.dot(w2_ref[...], h, preferred_element_type=jnp.float32) + b2_ref[...]
    h = jnp.maximum(h, 0.0)
    h = jnp.dot(w3_ref[...], h, preferred_element_type=jnp.float32) + b3_ref[...]
    h = jnp.maximum(h, 0.0)

    # Layer 4 (out=1): sublane reduction instead of an N=1 MXU matmul.
    # Output block [1, tile] is lane-dense -> unmasked full-width stores.
    o_ref[...] = jnp.sum(h * w4_ref[...], axis=0, keepdims=True) + b4_ref[...]


def mine_forward(x, y, params, *, tile_n=2048):
    """x, y: [N] arrays.  Returns [N, 1] f32, matching the torch module."""
    N = x.shape[0]
    xy = jnp.stack([x.astype(jnp.float32), y.astype(jnp.float32)], axis=0)  # [2, N]

    # Pick a large lane-aligned batch tile and zero-pad N up to a multiple of it.
    tile = min(tile_n, _round_up(N, 128))
    n_pad = _round_up(N, tile)
    if n_pad != N:
        xy = jnp.pad(xy, ((0, 0), (0, n_pad - N)))

    w1, b1 = params["w1"], params["b1"]   # [128, 2],   [128, 1]
    w2, b2 = params["w2"], params["b2"]   # [128, 128], [128, 1]
    w3, b3 = params["w3"], params["b3"]   # [128, 128], [128, 1]
    w4, b4 = params["w4"], params["b4"]   # [128, 1],   [1, 1]

    grid = (n_pad // tile,)

    def resident(shape):
        # Small parameter array, kept resident across all grid steps.
        return pl.BlockSpec(shape, lambda i: (0, 0))

    param_bytes = 4 * (128 * 2 + 128 + 128 * 128 + 128 + 128 * 128 + 128 + 128 + 1)
    cost = pl.CostEstimate(
        flops=2 * n_pad * (2 * 128 + 128 * 128 + 128 * 128 + 128),
        transcendentals=0,
        bytes_accessed=2 * n_pad * 4 + n_pad * 4 + param_bytes,
    )

    out = pl.pallas_call(
        mine_kernel,
        out_shape=jax.ShapeDtypeStruct((1, n_pad), jnp.float32),
        grid_spec=pltpu.PrefetchScalarGridSpec(
            num_scalar_prefetch=0,
            grid=grid,
            in_specs=[
                pl.BlockSpec((2, tile), lambda i: (0, i)),   # lane-dense input tile
                resident(w1.shape), resident(b1.shape),
                resident(w2.shape), resident(b2.shape),
                resident(w3.shape), resident(b3.shape),
                resident(w4.shape), resident(b4.shape),
            ],
            out_specs=pl.BlockSpec((1, tile), lambda i: (0, i)),  # lane-dense output
        ),
        compiler_params=pltpu.CompilerParams(
            dimension_semantics=("parallel",)),
        cost_estimate=cost,
    )(xy, w1, b1, w2, b2, w3, b3, w4, b4)

    return out[0, :N].reshape(N, 1)


def init_params(key):
    """Deterministic init mimicking torch.nn.Linear (uniform +-1/sqrt(fan_in)).
    Weights stored in torch [out, in] layout; biases as [out, 1] columns.
    The final layer's weight is stored pre-transposed as [128, 1]."""
    dims = [(128, 2), (128, 128), (128, 128), (1, 128)]   # (fan_out, fan_in)
    params = {}
    for idx, (fan_out, fan_in) in enumerate(dims, start=1):
        key, kw, kb = jax.random.split(key, 3)
        bound = 1.0 / (fan_in ** 0.5)
        w = jax.random.uniform(kw, (fan_out, fan_in), jnp.float32,
                               minval=-bound, maxval=bound)
        b = jax.random.uniform(kb, (fan_out, 1), jnp.float32,
                               minval=-bound, maxval=bound)
        if idx == 4:
            w = w.T                       # [128, 1] column for the reduction layer
        params[f"w{idx}"] = w
        params[f"b{idx}"] = b
    return params


def mine_reference(x, y, p):
    """Pure-JAX reference of the same forward pass (torch semantics)."""
    h = jnp.stack([x.astype(jnp.float32), y.astype(jnp.float32)], axis=1)  # [N, 2]
    h = jnp.maximum(h @ p["w1"].T + p["b1"].T, 0.0)
    h = jnp.maximum(h @ p["w2"].T + p["b2"].T, 0.0)
    h = jnp.maximum(h @ p["w3"].T + p["b3"].T, 0.0)
    return h @ p["w4"] + p["b4"]


if __name__ == "__main__":
    key = jax.random.PRNGKey(0)
    key, kx, ky = jax.random.split(key, 3)

    params = init_params(key)

    # Small, tile-aligned batch.
    N = 256
    x = jax.random.normal(kx, (N,), jnp.float32)
    y = jax.random.normal(ky, (N,), jnp.float32)
    out = jax.block_until_ready(mine_forward(x, y, params))
    ref = mine_reference(x, y, params)
    assert out.shape == (N, 1)
    assert jnp.allclose(out, ref, atol=1e-5, rtol=1e-5), "mismatch vs reference (N=256)"

    # Ragged batch exercises the padding path.
    key, kx2, ky2 = jax.random.split(key, 3)
    N2 = 200
    x2 = jax.random.normal(kx2, (N2,), jnp.float32)
    y2 = jax.random.normal(ky2, (N2,), jnp.float32)
    out2 = jax.block_until_ready(mine_forward(x2, y2, params))
    ref2 = mine_reference(x2, y2, params)
    assert out2.shape == (N2, 1)
    assert jnp.allclose(out2, ref2, atol=1e-5, rtol=1e-5), "mismatch vs reference (N=200)"

    print("KERNEL_OK")
</pallas_src>

<mosaic_0001>
module attributes {stable_mosaic.version = 11 : i64} {
  func.func @mine_kernel(%arg0: i32, %arg1: memref<2x256xf32, #tpu.memory_space<vmem>>, %arg2: memref<128x2xf32, #tpu.memory_space<vmem>>, %arg3: memref<128x1xf32, #tpu.memory_space<vmem>>, %arg4: memref<128x128xf32, #tpu.memory_space<vmem>>, %arg5: memref<128x1xf32, #tpu.memory_space<vmem>>, %arg6: memref<128x128xf32, #tpu.memory_space<vmem>>, %arg7: memref<128x1xf32, #tpu.memory_space<vmem>>, %arg8: memref<128x1xf32, #tpu.memory_space<vmem>>, %arg9: memref<1x1xf32, #tpu.memory_space<vmem>>, %arg10: memref<1x256xf32, #tpu.memory_space<vmem>>) attributes {dimension_semantics = [#tpu.dimension_semantics<parallel>], iteration_bounds = array<i64: 1>, scalar_prefetch = 0 : i64, scratch_operands = 0 : i64, tpu.core_type = #tpu.core_type<tc>, window_params = [{transform_indices = @transform_0, window_bounds = array<i64: 2, 256>}, {pipeline_mode = #tpu.pipeline_mode<synchronous>, transform_indices = @transform_1, window_bounds = array<i64: 128, 2>}, {pipeline_mode = #tpu.pipeline_mode<synchronous>, transform_indices = @transform_2, window_bounds = array<i64: 128, 1>}, {pipeline_mode = #tpu.pipeline_mode<synchronous>, transform_indices = @transform_3, window_bounds = array<i64: 128, 128>}, {pipeline_mode = #tpu.pipeline_mode<synchronous>, transform_indices = @transform_4, window_bounds = array<i64: 128, 1>}, {pipeline_mode = #tpu.pipeline_mode<synchronous>, transform_indices = @transform_5, window_bounds = array<i64: 128, 128>}, {pipeline_mode = #tpu.pipeline_mode<synchronous>, transform_indices = @transform_6, window_bounds = array<i64: 128, 1>}, {pipeline_mode = #tpu.pipeline_mode<synchronous>, transform_indices = @transform_7, window_bounds = array<i64: 128, 1>}, {pipeline_mode = #tpu.pipeline_mode<synchronous>, transform_indices = @transform_8, window_bounds = array<i64: 1, 1>}, {transform_indices = @transform_9, window_bounds = array<i64: 1, 256>}]} {
    %c0 = arith.constant 0 : index
    %c0_0 = arith.constant 0 : index
    %0 = vector.load %arg1[%c0, %c0_0] : memref<2x256xf32, #tpu.memory_space<vmem>>, vector<1x256xf32>
    %c1 = arith.constant 1 : index
    %c0_1 = arith.constant 0 : index
    %1 = vector.load %arg1[%c1, %c0_1] : memref<2x256xf32, #tpu.memory_space<vmem>>, vector<1x256xf32>
    %c0_2 = arith.constant 0 : index
    %c0_3 = arith.constant 0 : index
    %2 = vector.load %arg2[%c0_2, %c0_3] : memref<128x2xf32, #tpu.memory_space<vmem>>, vector<128x1xf32>
    %3 = vector.broadcast %2 : vector<128x1xf32> to vector<128x256xf32>
    %4 = vector.broadcast %0 : vector<1x256xf32> to vector<128x256xf32>
    %5 = arith.mulf %3, %4 : vector<128x256xf32>
    %c0_4 = arith.constant 0 : index
    %c1_5 = arith.constant 1 : index
    %6 = vector.load %arg2[%c0_4, %c1_5] : memref<128x2xf32, #tpu.memory_space<vmem>>, vector<128x1xf32>
    %7 = vector.broadcast %6 : vector<128x1xf32> to vector<128x256xf32>
    %8 = vector.broadcast %1 : vector<1x256xf32> to vector<128x256xf32>
    %9 = arith.mulf %7, %8 : vector<128x256xf32>
    %10 = arith.addf %5, %9 : vector<128x256xf32>
    %c0_6 = arith.constant 0 : index
    %c0_7 = arith.constant 0 : index
    %11 = vector.load %arg3[%c0_6, %c0_7] : memref<128x1xf32, #tpu.memory_space<vmem>>, vector<128x1xf32>
    %12 = vector.broadcast %11 : vector<128x1xf32> to vector<128x256xf32>
    %13 = arith.addf %10, %12 : vector<128x256xf32>
    %cst = arith.constant 0.000000e+00 : f32
    %14 = vector.broadcast %cst : f32 to vector<128x256xf32>
    %15 = arith.maximumf %13, %14 : vector<128x256xf32>
    %c0_8 = arith.constant 0 : index
    %c0_9 = arith.constant 0 : index
    %16 = vector.load %arg4[%c0_8, %c0_9] : memref<128x128xf32, #tpu.memory_space<vmem>>, vector<128x128xf32>
    %cst_10 = arith.constant dense<0.000000e+00> : vector<128x256xf32>
    %17 = tpu.matmul %16, %15, %cst_10 {dimension_numbers = #tpu.dot_dimension_numbers<[1], [0], [0], [1], [0, 0, 1, 1], [], []>} : vector<128x128xf32>, vector<128x256xf32>, vector<128x256xf32> -> vector<128x256xf32>
    %c0_11 = arith.constant 0 : index
    %c0_12 = arith.constant 0 : index
    %18 = vector.load %arg5[%c0_11, %c0_12] : memref<128x1xf32, #tpu.memory_space<vmem>>, vector<128x1xf32>
    %19 = vector.broadcast %18 : vector<128x1xf32> to vector<128x256xf32>
    %20 = arith.addf %17, %19 : vector<128x256xf32>
    %cst_13 = arith.constant 0.000000e+00 : f32
    %21 = vector.broadcast %cst_13 : f32 to vector<128x256xf32>
    %22 = arith.maximumf %20, %21 : vector<128x256xf32>
    %c0_14 = arith.constant 0 : index
    %c0_15 = arith.constant 0 : index
    %23 = vector.load %arg6[%c0_14, %c0_15] : memref<128x128xf32, #tpu.memory_space<vmem>>, vector<128x128xf32>
    %cst_16 = arith.constant dense<0.000000e+00> : vector<128x256xf32>
    %24 = tpu.matmul %23, %22, %cst_16 {dimension_numbers = #tpu.dot_dimension_numbers<[1], [0], [0], [1], [0, 0, 1, 1], [], []>} : vector<128x128xf32>, vector<128x256xf32>, vector<128x256xf32> -> vector<128x256xf32>
    %c0_17 = arith.constant 0 : index
    %c0_18 = arith.constant 0 : index
    %25 = vector.load %arg7[%c0_17, %c0_18] : memref<128x1xf32, #tpu.memory_space<vmem>>, vector<128x1xf32>
    %26 = vector.broadcast %25 : vector<128x1xf32> to vector<128x256xf32>
    %27 = arith.addf %24, %26 : vector<128x256xf32>
    %cst_19 = arith.constant 0.000000e+00 : f32
    %28 = vector.broadcast %cst_19 : f32 to vector<128x256xf32>
    %29 = arith.maximumf %27, %28 : vector<128x256xf32>
    %c0_20 = arith.constant 0 : index
    %c0_21 = arith.constant 0 : index
    %30 = vector.load %arg8[%c0_20, %c0_21] : memref<128x1xf32, #tpu.memory_space<vmem>>, vector<128x1xf32>
    %31 = vector.broadcast %30 : vector<128x1xf32> to vector<128x256xf32>
    %32 = arith.mulf %29, %31 : vector<128x256xf32>
    %cst_22 = arith.constant dense<0.000000e+00> : vector<256xf32>
    %33 = vector.multi_reduction <add>, %32, %cst_22 [0] : vector<128x256xf32> to vector<256xf32>
    %34 = vector.shape_cast %33 : vector<256xf32> to vector<1x256xf32>
    %c0_23 = arith.constant 0 : index
    %c0_24 = arith.constant 0 : index
    %35 = vector.load %arg9[%c0_23, %c0_24] : memref<1x1xf32, #tpu.memory_space<vmem>>, vector<1x1xf32>
    %36 = vector.broadcast %35 : vector<1x1xf32> to vector<1x256xf32>
    %37 = arith.addf %34, %36 : vector<1x256xf32>
    %c0_25 = arith.constant 0 : index
    %c0_26 = arith.constant 0 : index
    %38 = vector.load %arg10[%c0_25, %c0_26] : memref<1x256xf32, #tpu.memory_space<vmem>>, vector<1x256xf32>
    tpu.vector_store %arg10[%c0_25, %c0_26], %37 {strides = array<i32>} : memref<1x256xf32, #tpu.memory_space<vmem>>, vector<1x256xf32>,
    return
  }
  func.func @transform_0(%arg0: i32) -> (i32, i32) {
    %c0_i32 = arith.constant 0 : i32
    %c0_i32_0 = arith.constant 0 : i32
    return %c0_i32, %arg0 : i32, i32
  }
  func.func @transform_1(%arg0: i32) -> (i32, i32) {
    %c0_i32 = arith.constant 0 : i32
    %c0_i32_0 = arith.constant 0 : i32
    %c0_i32_1 = arith.constant 0 : i32
    return %c0_i32, %c0_i32_0 : i32, i32
  }
  func.func @transform_2(%arg0: i32) -> (i32, i32) {
    %c0_i32 = arith.constant 0 : i32
    %c0_i32_0 = arith.constant 0 : i32
    %c0_i32_1 = arith.constant 0 : i32
    return %c0_i32, %c0_i32_0 : i32, i32
  }
  func.func @transform_3(%arg0: i32) -> (i32, i32) {
    %c0_i32 = arith.constant 0 : i32
    %c0_i32_0 = arith.constant 0 : i32
    %c0_i32_1 = arith.constant 0 : i32
    return %c0_i32, %c0_i32_0 : i32, i32
  }
  func.func @transform_4(%arg0: i32) -> (i32, i32) {
    %c0_i32 = arith.constant 0 : i32
    %c0_i32_0 = arith.constant 0 : i32
    %c0_i32_1 = arith.constant 0 : i32
    return %c0_i32, %c0_i32_0 : i32, i32
  }
  func.func @transform_5(%arg0: i32) -> (i32, i32) {
    %c0_i32 = arith.constant 0 : i32
    %c0_i32_0 = arith.constant 0 : i32
    %c0_i32_1 = arith.constant 0 : i32
    return %c0_i32, %c0_i32_0 : i32, i32
  }
  func.func @transform_6(%arg0: i32) -> (i32, i32) {
    %c0_i32 = arith.constant 0 : i32
    %c0_i32_0 = arith.constant 0 : i32
    %c0_i32_1 = arith.constant 0 : i32
    return %c0_i32, %c0_i32_0 : i32, i32
  }
  func.func @transform_7(%arg0: i32) -> (i32, i32) {
    %c0_i32 = arith.constant 0 : i32
    %c0_i32_0 = arith.constant 0 : i32
    %c0_i32_1 = arith.constant 0 : i32
    return %c0_i32, %c0_i32_0 : i32, i32
  }
  func.func @transform_8(%arg0: i32) -> (i32, i32) {
    %c0_i32 = arith.constant 0 : i32
    %c0_i32_0 = arith.constant 0 : i32
    %c0_i32_1 = arith.constant 0 : i32
    return %c0_i32, %c0_i32_0 : i32, i32
  }
  func.func @transform_9(%arg0: i32) -> (i32, i32) {
    %c0_i32 = arith.constant 0 : i32
    %c0_i32_0 = arith.constant 0 : i32
    return %c0_i32, %arg0 : i32, i32
  }
}

</mosaic_0001>

<llo_original>
// kernel: tpu_custom_call.1
$region0: #{tpu_custom_call.1}
  #allocation0 [shape = 'u32[]', space=smem, size = 0x4, offset = 0x4, fixed_abs, tag = 'smem constant byte address 0x4 - core index']
  #allocation1 [shape = 'u32[144,128]{1,0:T(1,128)}', space=vmem, size = 0x12000, scoped, tag = 'internal scratch']
  #allocation2 [shape = 'f32[1,1]{1,0:T(1,128)S(1)}', space=vmem, size = 0x200, scoped, tag = 'scoped memory for tpu_custom_call.1']
  %s0 = inlined_call_operand.vmem [shape: f32[2,256], index: 0, kind: input, shape index: {}]
  %s1 = inlined_call_operand.vmem [shape: f32[128,2], index: 1, kind: input, shape index: {}]
  %s2 = inlined_call_operand.vmem [shape: f32[128,1], index: 2, kind: input, shape index: {}]
  %s3 = inlined_call_operand.vmem [shape: f32[128,128], index: 3, kind: input, shape index: {}]
  %s4 = inlined_call_operand.vmem [shape: f32[128,1], index: 4, kind: input, shape index: {}]
  %s5 = inlined_call_operand.vmem [shape: f32[128,128], index: 5, kind: input, shape index: {}]
  %s6 = inlined_call_operand.vmem [shape: f32[128,1], index: 6, kind: input, shape index: {}]
  %s7 = inlined_call_operand.vmem [shape: f32[128,1], index: 7, kind: input, shape index: {}]
  %s8 = inlined_call_operand.<no memory space> [shape: f32[1,1], index: 8, kind: input, shape index: {}]
  %s9 = inlined_call_operand.hbm [shape: f32[1,256], index: 9, kind: output, shape index: {}]
  %s10 = sld [smem:[#allocation0]]
  $region46: #{tpu_custom_call.1} parent=0
    _
  %s12 = ssub.s32 1, %s10
  %s13 = scalar_select 0, %s12, %s10
  %v14 = vstv %s8
  %15 = vst [vmem:[#allocation2] sm:$0x1] %v14
  $region1: #{tpu_custom_call.1} parent=0
    #allocation3 [shape = 'u8[1024]{0}', space=vmem, size = 0x400, scoped, tag = 'output window, operand 0, single buffered']
    #allocation4 [shape = 's32[1]{0}', space=sflag, size = 0x4, scoped, tag = 'scoped memory for tpu_custom_call.1']
    %16 = vsyncpa [#allocation4], 0
    // Predicated region
    $region2: #{tpu_custom_call.1} parent=1 // pred_check
      _
    $region3: #{tpu_custom_call.1} parent=1 // pred_check_branch
      %18 = sbr.rel (0) target = $region5
    $region4: #{tpu_custom_call.1} parent=1 // pred_region
      _
    $region5: #{tpu_custom_call.1} parent=1 // pred_fallthru
      _
    // Predicated region
    $region6: #{tpu_custom_call.1} parent=1 // pred_check
      _
    $region7: #{tpu_custom_call.1} parent=1 // pred_check_branch
      %20 = sbr.rel (0) target = $region9
    $region8: #{tpu_custom_call.1} parent=1 // pred_region
      _
    $region9: #{tpu_custom_call.1} parent=1 // pred_fallthru
      _
    // Predicated region
    $region10: #{tpu_custom_call.1} parent=1 // pred_check
      _
    $region11: #{tpu_custom_call.1} parent=1 // pred_check_branch
      %22 = sbr.rel (0) target = $region13
    $region12: #{tpu_custom_call.1} parent=1 // pred_region
      _
    $region13: #{tpu_custom_call.1} parent=1 // pred_fallthru
      _
    // Predicated region
    $region14: #{tpu_custom_call.1} parent=1 // pred_check
      _
    $region15: #{tpu_custom_call.1} parent=1 // pred_check_branch
      %24 = sbr.rel (0) target = $region17
    $region16: #{tpu_custom_call.1} parent=1 // pred_region
      _
    $region17: #{tpu_custom_call.1} parent=1 // pred_fallthru
      _
    // Predicated region
    $region18: #{tpu_custom_call.1} parent=1 // pred_check
      _
    $region19: #{tpu_custom_call.1} parent=1 // pred_check_branch
      %26 = sbr.rel (0) target = $region21
    $region20: #{tpu_custom_call.1} parent=1 // pred_region
      _
    $region21: #{tpu_custom_call.1} parent=1 // pred_fallthru
      _
    // Predicated region
    $region22: #{tpu_custom_call.1} parent=1 // pred_check
      _
    $region23: #{tpu_custom_call.1} parent=1 // pred_check_branch
      %28 = sbr.rel (0) target = $region25
    $region24: #{tpu_custom_call.1} parent=1 // pred_region
      _
    $region25: #{tpu_custom_call.1} parent=1 // pred_fallthru
      _
    // Predicated region
    $region26: #{tpu_custom_call.1} parent=1 // pred_check
      _
    $region27: #{tpu_custom_call.1} parent=1 // pred_check_branch
      %30 = sbr.rel (0) target = $region29
    $region28: #{tpu_custom_call.1} parent=1 // pred_region
      _
    $region29: #{tpu_custom_call.1} parent=1 // pred_fallthru
      _
    // Predicated region
    $region30: #{tpu_custom_call.1} parent=1 // pred_check
      _
    $region31: #{tpu_custom_call.1} parent=1 // pred_check_branch
      %32 = sbr.rel (0) target = $region33
    $region32: #{tpu_custom_call.1} parent=1 // pred_region
      _
    $region33: #{tpu_custom_call.1} parent=1 // pred_fallthru
      _
    // Predicated region
    $region34: #{tpu_custom_call.1} parent=1 // pred_check
      _
    $region35: #{tpu_custom_call.1} parent=1 // pred_check_branch
      %34 = sbr.rel (0) target = $region37
    $region36: #{tpu_custom_call.1} parent=1 // pred_region
      _
    $region37: #{tpu_custom_call.1} parent=1 // pred_fallthru
      _
    %v35 = vld [vmem:[%s0] ss:$2 sm:$0x3]
    %s36 = scalar_lea.vmem %s0, 1
    %v37 = vld [vmem:[%s36] ss:$2 sm:$0x3]
    %v38 = vld [vmem:[%s1] sm:$0xff]
    %v39 = vld [vmem:[%s1 + $0x8] sm:$0xff]
    %v40 = vld [vmem:[%s1 + $0x10] sm:$0xff]
    %v41 = vld [vmem:[%s1 + $0x18] sm:$0xff]
    %v42 = vld [vmem:[%s1 + $0x20] sm:$0xff]
    %v43 = vld [vmem:[%s1 + $0x28] sm:$0xff]
    %v44 = vld [vmem:[%s1 + $0x30] sm:$0xff]
    %v45 = vld [vmem:[%s1 + $0x38] sm:$0xff]
    %v46 = vld [vmem:[%s1 + $0x40] sm:$0xff]
    %v47 = vld [vmem:[%s1 + $0x48] sm:$0xff]
    %v48 = vld [vmem:[%s1 + $0x50] sm:$0xff]
    %v49 = vld [vmem:[%s1 + $0x58] sm:$0xff]
    %v50 = vld [vmem:[%s1 + $0x60] sm:$0xff]
    %v51 = vld [vmem:[%s1 + $0x68] sm:$0xff]
    %v52 = vld [vmem:[%s1 + $0x70] sm:$0xff]
    %v53 = vld [vmem:[%s1 + $0x78] sm:$0xff]
    %55 = vset.pattern.permute.xlu0 0
    %56 = vperm.xlu0 %55, %v38
    %v57 = vpop.permute.xlu0 %56
    %60 = vset.pattern.permute.xlu0 0
    %61 = vperm.xlu0 %60, %v39
    %v62 = vpop.permute.xlu0 %61
    %65 = vset.pattern.permute.xlu0 0
    %66 = vperm.xlu0 %65, %v40
    %v67 = vpop.permute.xlu0 %66
    %70 = vset.pattern.permute.xlu0 0
    %71 = vperm.xlu0 %70, %v41
    %v72 = vpop.permute.xlu0 %71
    %75 = vset.pattern.permute.xlu0 0
    %76 = vperm.xlu0 %75, %v42
    %v77 = vpop.permute.xlu0 %76
    %80 = vset.pattern.permute.xlu0 0
    %81 = vperm.xlu0 %80, %v43
    %v82 = vpop.permute.xlu0 %81
    %85 = vset.pattern.permute.xlu0 0
    %86 = vperm.xlu0 %85, %v44
    %v87 = vpop.permute.xlu0 %86
    %90 = vset.pattern.permute.xlu0 0
    %91 = vperm.xlu0 %90, %v45
    %v92 = vpop.permute.xlu0 %91
    %95 = vset.pattern.permute.xlu0 0
    %96 = vperm.xlu0 %95, %v46
    %v97 = vpop.permute.xlu0 %96
    %100 = vset.pattern.permute.xlu0 0
    %101 = vperm.xlu0 %100, %v47
    %v102 = vpop.permute.xlu0 %101
    %105 = vset.pattern.permute.xlu0 0
    %106 = vperm.xlu0 %105, %v48
    %v107 = vpop.permute.xlu0 %106
    %110 = vset.pattern.permute.xlu0 0
    %111 = vperm.xlu0 %110, %v49
    %v112 = vpop.permute.xlu0 %111
    %115 = vset.pattern.permute.xlu0 0
    %116 = vperm.xlu0 %115, %v50
    %v117 = vpop.permute.xlu0 %116
    %120 = vset.pattern.permute.xlu0 0
    %121 = vperm.xlu0 %120, %v51
    %v122 = vpop.permute.xlu0 %121
    %125 = vset.pattern.permute.xlu0 0
    %126 = vperm.xlu0 %125, %v52
    %v127 = vpop.permute.xlu0 %126
    %130 = vset.pattern.permute.xlu0 0
    %131 = vperm.xlu0 %130, %v53
    %v132 = vpop.permute.xlu0 %131
    %v135 = vlaneseq
    %v136 = vshrl.u32 %v135, 7
    %v137 = vsub.s32 0, %v136
    %v138 = vrot.slane %v35, %v137
    %v139 = vlaneseq
    %v140 = vshrl.u32 %v139, 7
    %v141 = vsub.s32 1, %v140
    %v142 = vrot.slane %v35, %v141
    %v145 = vmul.f32 %v57, %v138
    %v146 = vmul.f32 %v57, %v142
    %v147 = vmul.f32 %v62, %v138
    %v148 = vmul.f32 %v62, %v142
    %v149 = vmul.f32 %v67, %v138
    %v150 = vmul.f32 %v67, %v142
    %v151 = vmul.f32 %v72, %v138
    %v152 = vmul.f32 %v72, %v142
    %v153 = vmul.f32 %v77, %v138
    %v154 = vmul.f32 %v77, %v142
    %v155 = vmul.f32 %v82, %v138
    %v156 = vmul.f32 %v82, %v142
    %v157 = vmul.f32 %v87, %v138
    %v158 = vmul.f32 %v87, %v142
    %v159 = vmul.f32 %v92, %v138
    %v160 = vmul.f32 %v92, %v142
    %v161 = vmul.f32 %v97, %v138
    %v162 = vmul.f32 %v97, %v142
    %v163 = vmul.f32 %v102, %v138
    %v164 = vmul.f32 %v102, %v142
    %v165 = vmul.f32 %v107, %v138
    %v166 = vmul.f32 %v107, %v142
    %v167 = vmul.f32 %v112, %v138
    %v168 = vmul.f32 %v112, %v142
    %v169 = vmul.f32 %v117, %v138
    %v170 = vmul.f32 %v117, %v142
    %v171 = vmul.f32 %v122, %v138
    %v172 = vmul.f32 %v122, %v142
    %v173 = vmul.f32 %v127, %v138
    %v174 = vmul.f32 %v127, %v142
    %v175 = vmul.f32 %v132, %v138
    %v176 = vmul.f32 %v132, %v142
    %177 = vset.pattern.permute.xlu0 1
    %178 = vperm.xlu0 %177, %v38
    %v179 = vpop.permute.xlu0 %178
    %181 = vset.pattern.permute.xlu0 1
    %182 = vperm.xlu0 %181, %v39
    %v183 = vpop.permute.xlu0 %182
    %185 = vset.pattern.permute.xlu0 1
    %186 = vperm.xlu0 %185, %v40
    %v187 = vpop.permute.xlu0 %186
    %189 = vset.pattern.permute.xlu0 1
    %190 = vperm.xlu0 %189, %v41
    %v191 = vpop.permute.xlu0 %190
    %193 = vset.pattern.permute.xlu0 1
    %194 = vperm.xlu0 %193, %v42
    %v195 = vpop.permute.xlu0 %194
    %197 = vset.pattern.permute.xlu0 1
    %198 = vperm.xlu0 %197, %v43
    %v199 = vpop.permute.xlu0 %198
    %201 = vset.pattern.permute.xlu0 1
    %202 = vperm.xlu0 %201, %v44
    %v203 = vpop.permute.xlu0 %202
    %205 = vset.pattern.permute.xlu0 1
    %206 = vperm.xlu0 %205, %v45
    %v207 = vpop.permute.xlu0 %206
    %209 = vset.pattern.permute.xlu0 1
    %210 = vperm.xlu0 %209, %v46
    %v211 = vpop.permute.xlu0 %210
    %213 = vset.pattern.permute.xlu0 1
    %214 = vperm.xlu0 %213, %v47
    %v215 = vpop.permute.xlu0 %214
    %217 = vset.pattern.permute.xlu0 1
    %218 = vperm.xlu0 %217, %v48
    %v219 = vpop.permute.xlu0 %218
    %221 = vset.pattern.permute.xlu0 1
    %222 = vperm.xlu0 %221, %v49
    %v223 = vpop.permute.xlu0 %222
    %225 = vset.pattern.permute.xlu0 1
    %226 = vperm.xlu0 %225, %v50
    %v227 = vpop.permute.xlu0 %226
    %229 = vset.pattern.permute.xlu0 1
    %230 = vperm.xlu0 %229, %v51
    %v231 = vpop.permute.xlu0 %230
    %233 = vset.pattern.permute.xlu0 1
    %234 = vperm.xlu0 %233, %v52
    %v235 = vpop.permute.xlu0 %234
    %237 = vset.pattern.permute.xlu0 1
    %238 = vperm.xlu0 %237, %v53
    %v239 = vpop.permute.xlu0 %238
    %v242 = vlaneseq
    %v243 = vshrl.u32 %v242, 7
    %v244 = vsub.s32 0, %v243
    %v245 = vrot.slane %v37, %v244
    %v246 = vlaneseq
    %v247 = vshrl.u32 %v246, 7
    %v248 = vsub.s32 1, %v247
    %v249 = vrot.slane %v37, %v248
    %v252 = vmul.f32 %v179, %v245
    %v253 = vmul.f32 %v179, %v249
    %v254 = vmul.f32 %v183, %v245
    %v255 = vmul.f32 %v183, %v249
    %v256 = vmul.f32 %v187, %v245
    %v257 = vmul.f32 %v187, %v249
    %v258 = vmul.f32 %v191, %v245
    %v259 = vmul.f32 %v191, %v249
    %v260 = vmul.f32 %v195, %v245
    %v261 = vmul.f32 %v195, %v249
    %v262 = vmul.f32 %v199, %v245
    %v263 = vmul.f32 %v199, %v249
    %v264 = vmul.f32 %v203, %v245
    %v265 = vmul.f32 %v203, %v249
    %v266 = vmul.f32 %v207, %v245
    %v267 = vmul.f32 %v207, %v249
    %v268 = vmul.f32 %v211, %v245
    %v269 = vmul.f32 %v211, %v249
    %v270 = vmul.f32 %v215, %v245
    %v271 = vmul.f32 %v215, %v249
    %v272 = vmul.f32 %v219, %v245
    %v273 = vmul.f32 %v219, %v249
    %v274 = vmul.f32 %v223, %v245
    %v275 = vmul.f32 %v223, %v249
    %v276 = vmul.f32 %v227, %v245
    %v277 = vmul.f32 %v227, %v249
    %v278 = vmul.f32 %v231, %v245
    %v279 = vmul.f32 %v231, %v249
    %v280 = vmul.f32 %v235, %v245
    %v281 = vmul.f32 %v235, %v249
    %v282 = vmul.f32 %v239, %v245
    %v283 = vmul.f32 %v239, %v249
    %v284 = vadd.f32 %v145, %v252
    %v285 = vadd.f32 %v146, %v253
    %v286 = vadd.f32 %v147, %v254
    %v287 = vadd.f32 %v148, %v255
    %v288 = vadd.f32 %v149, %v256
    %v289 = vadd.f32 %v150, %v257
    %v290 = vadd.f32 %v151, %v258
    %v291 = vadd.f32 %v152, %v259
    %v292 = vadd.f32 %v153, %v260
    %v293 = vadd.f32 %v154, %v261
    %v294 = vadd.f32 %v155, %v262
    %v295 = vadd.f32 %v156, %v263
    %v296 = vadd.f32 %v157, %v264
    %v297 = vadd.f32 %v158, %v265
    %v298 = vadd.f32 %v159, %v266
    %v299 = vadd.f32 %v160, %v267
    %v300 = vadd.f32 %v161, %v268
    %v301 = vadd.f32 %v162, %v269
    %v302 = vadd.f32 %v163, %v270
    %v303 = vadd.f32 %v164, %v271
    %v304 = vadd.f32 %v165, %v272
    %v305 = vadd.f32 %v166, %v273
    %v306 = vadd.f32 %v167, %v274
    %v307 = vadd.f32 %v168, %v275
    %v308 = vadd.f32 %v169, %v276
    %v309 = vadd.f32 %v170, %v277
    %v310 = vadd.f32 %v171, %v278
    %v311 = vadd.f32 %v172, %v279
    %v312 = vadd.f32 %v173, %v280
    %v313 = vadd.f32 %v174, %v281
    %v314 = vadd.f32 %v175, %v282
    %v315 = vadd.f32 %v176, %v283
    %v316 = vld [vmem:[%s2] sm:$0xff]
    %v317 = vld [vmem:[%s2 + $0x8] sm:$0xff]
    %v318 = vld [vmem:[%s2 + $0x10] sm:$0xff]
    %v319 = vld [vmem:[%s2 + $0x18] sm:$0xff]
    %v320 = vld [vmem:[%s2 + $0x20] sm:$0xff]
    %v321 = vld [vmem:[%s2 + $0x28] sm:$0xff]
    %v322 = vld [vmem:[%s2 + $0x30] sm:$0xff]
    %v323 = vld [vmem:[%s2 + $0x38] sm:$0xff]
    %v324 = vld [vmem:[%s2 + $0x40] sm:$0xff]
    %v325 = vld [vmem:[%s2 + $0x48] sm:$0xff]
    %v326 = vld [vmem:[%s2 + $0x50] sm:$0xff]
    %v327 = vld [vmem:[%s2 + $0x58] sm:$0xff]
    %v328 = vld [vmem:[%s2 + $0x60] sm:$0xff]
    %v329 = vld [vmem:[%s2 + $0x68] sm:$0xff]
    %v330 = vld [vmem:[%s2 + $0x70] sm:$0xff]
    %v331 = vld [vmem:[%s2 + $0x78] sm:$0xff]
    %333 = vset.pattern.permute.xlu0 0
    %334 = vperm.xlu0 %333, %v316
    %v335 = vpop.permute.xlu0 %334
    %338 = vset.pattern.permute.xlu0 0
    %339 = vperm.xlu0 %338, %v317
    %v340 = vpop.permute.xlu0 %339
    %343 = vset.pattern.permute.xlu0 0
    %344 = vperm.xlu0 %343, %v318
    %v345 = vpop.permute.xlu0 %344
    %348 = vset.pattern.permute.xlu0 0
    %349 = vperm.xlu0 %348, %v319
    %v350 = vpop.permute.xlu0 %349
    %353 = vset.pattern.permute.xlu0 0
    %354 = vperm.xlu0 %353, %v320
    %v355 = vpop.permute.xlu0 %354
    %358 = vset.pattern.permute.xlu0 0
    %359 = vperm.xlu0 %358, %v321
    %v360 = vpop.permute.xlu0 %359
    %363 = vset.pattern.permute.xlu0 0
    %364 = vperm.xlu0 %363, %v322
    %v365 = vpop.permute.xlu0 %364
    %368 = vset.pattern.permute.xlu0 0
    %369 = vperm.xlu0 %368, %v323
    %v370 = vpop.permute.xlu0 %369
    %373 = vset.pattern.permute.xlu0 0
    %374 = vperm.xlu0 %373, %v324
    %v375 = vpop.permute.xlu0 %374
    %378 = vset.pattern.permute.xlu0 0
    %379 = vperm.xlu0 %378, %v325
    %v380 = vpop.permute.xlu0 %379
    %383 = vset.pattern.permute.xlu0 0
    %384 = vperm.xlu0 %383, %v326
    %v385 = vpop.permute.xlu0 %384
    %388 = vset.pattern.permute.xlu0 0
    %389 = vperm.xlu0 %388, %v327
    %v390 = vpop.permute.xlu0 %389
    %393 = vset.pattern.permute.xlu0 0
    %394 = vperm.xlu0 %393, %v328
    %v395 = vpop.permute.xlu0 %394
    %398 = vset.pattern.permute.xlu0 0
    %399 = vperm.xlu0 %398, %v329
    %v400 = vpop.permute.xlu0 %399
    %403 = vset.pattern.permute.xlu0 0
    %404 = vperm.xlu0 %403, %v330
    %v405 = vpop.permute.xlu0 %404
    %408 = vset.pattern.permute.xlu0 0
    %409 = vperm.xlu0 %408, %v331
    %v410 = vpop.permute.xlu0 %409
    %v412 = vadd.f32 %v284, %v335
    %v413 = vadd.f32 %v285, %v335
    %v414 = vadd.f32 %v286, %v340
    %v415 = vadd.f32 %v287, %v340
    %v416 = vadd.f32 %v288, %v345
    %v417 = vadd.f32 %v289, %v345
    %v418 = vadd.f32 %v290, %v350
    %v419 = vadd.f32 %v291, %v350
    %v420 = vadd.f32 %v292, %v355
    %v421 = vadd.f32 %v293, %v355
    %v422 = vadd.f32 %v294, %v360
    %v423 = vadd.f32 %v295, %v360
    %v424 = vadd.f32 %v296, %v365
    %v425 = vadd.f32 %v297, %v365
    %v426 = vadd.f32 %v298, %v370
    %v427 = vadd.f32 %v299, %v370
    %v428 = vadd.f32 %v300, %v375
    %v429 = vadd.f32 %v301, %v375
    %v430 = vadd.f32 %v302, %v380
    %v431 = vadd.f32 %v303, %v380
    %v432 = vadd.f32 %v304, %v385
    %v433 = vadd.f32 %v305, %v385
    %v434 = vadd.f32 %v306, %v390
    %v435 = vadd.f32 %v307, %v390
    %v436 = vadd.f32 %v308, %v395
    %v437 = vadd.f32 %v309, %v395
    %v438 = vadd.f32 %v310, %v400
    %v439 = vadd.f32 %v311, %v400
    %v440 = vadd.f32 %v312, %v405
    %v441 = vadd.f32 %v313, %v405
    %v442 = vadd.f32 %v314, %v410
    %v443 = vadd.f32 %v315, %v410
    %v444 = vmax.f32 %v412, 0.0
    %v445 = vmax.f32 %v413, 0.0
    %v446 = vmax.f32 %v414, 0.0
    %v447 = vmax.f32 %v415, 0.0
    %v448 = vmax.f32 %v416, 0.0
    %v449 = vmax.f32 %v417, 0.0
    %v450 = vmax.f32 %v418, 0.0
    %v451 = vmax.f32 %v419, 0.0
    %v452 = vmax.f32 %v420, 0.0
    %v453 = vmax.f32 %v421, 0.0
    %v454 = vmax.f32 %v422, 0.0
    %v455 = vmax.f32 %v423, 0.0
    %v456 = vmax.f32 %v424, 0.0
    %v457 = vmax.f32 %v425, 0.0
    %v458 = vmax.f32 %v426, 0.0
    %v459 = vmax.f32 %v427, 0.0
    %v460 = vmax.f32 %v428, 0.0
    %v461 = vmax.f32 %v429, 0.0
    %v462 = vmax.f32 %v430, 0.0
    %v463 = vmax.f32 %v431, 0.0
    %v464 = vmax.f32 %v432, 0.0
    %v465 = vmax.f32 %v433, 0.0
    %v466 = vmax.f32 %v434, 0.0
    %v467 = vmax.f32 %v435, 0.0
    %v468 = vmax.f32 %v436, 0.0
    %v469 = vmax.f32 %v437, 0.0
    %v470 = vmax.f32 %v438, 0.0
    %v471 = vmax.f32 %v439, 0.0
    %v472 = vmax.f32 %v440, 0.0
    %v473 = vmax.f32 %v441, 0.0
    %v474 = vmax.f32 %v442, 0.0
    %v475 = vmax.f32 %v443, 0.0
    %v476 = vld [vmem:[%s3] sm:$0xff]
    %v477 = vld [vmem:[%s3 + $0x8] sm:$0xff]
    %v478 = vld [vmem:[%s3 + $0x10] sm:$0xff]
    %v479 = vld [vmem:[%s3 + $0x18] sm:$0xff]
    %v480 = vld [vmem:[%s3 + $0x20] sm:$0xff]
    %v481 = vld [vmem:[%s3 + $0x28] sm:$0xff]
    %v482 = vld [vmem:[%s3 + $0x30] sm:$0xff]
    %v483 = vld [vmem:[%s3 + $0x38] sm:$0xff]
    %v484 = vld [vmem:[%s3 + $0x40] sm:$0xff]
    %v485 = vld [vmem:[%s3 + $0x48] sm:$0xff]
    %v486 = vld [vmem:[%s3 + $0x50] sm:$0xff]
    %v487 = vld [vmem:[%s3 + $0x58] sm:$0xff]
    %v488 = vld [vmem:[%s3 + $0x60] sm:$0xff]
    %v489 = vld [vmem:[%s3 + $0x68] sm:$0xff]
    %v490 = vld [vmem:[%s3 + $0x70] sm:$0xff]
    %v491 = vld [vmem:[%s3 + $0x78] sm:$0xff]
    %v492 = vld [vmem:[%s4] sm:$0xff]
    %v493 = vld [vmem:[%s4 + $0x8] sm:$0xff]
    %v494 = vld [vmem:[%s4 + $0x10] sm:$0xff]
    %v495 = vld [vmem:[%s4 + $0x18] sm:$0xff]
    %v496 = vld [vmem:[%s4 + $0x20] sm:$0xff]
    %v497 = vld [vmem:[%s4 + $0x28] sm:$0xff]
    %v498 = vld [vmem:[%s4 + $0x30] sm:$0xff]
    %v499 = vld [vmem:[%s4 + $0x38] sm:$0xff]
    %v500 = vld [vmem:[%s4 + $0x40] sm:$0xff]
    %v501 = vld [vmem:[%s4 + $0x48] sm:$0xff]
    %v502 = vld [vmem:[%s4 + $0x50] sm:$0xff]
    %v503 = vld [vmem:[%s4 + $0x58] sm:$0xff]
    %v504 = vld [vmem:[%s4 + $0x60] sm:$0xff]
    %v505 = vld [vmem:[%s4 + $0x68] sm:$0xff]
    %v506 = vld [vmem:[%s4 + $0x70] sm:$0xff]
    %v507 = vld [vmem:[%s4 + $0x78] sm:$0xff]
    %509 = vset.pattern.permute.xlu0 0
    %510 = vperm.xlu0 %509, %v492
    %v511 = vpop.permute.xlu0 %510
    %514 = vset.pattern.permute.xlu0 0
    %515 = vperm.xlu0 %514, %v493
    %v516 = vpop.permute.xlu0 %515
    %519 = vset.pattern.permute.xlu0 0
    %520 = vperm.xlu0 %519, %v494
    %v521 = vpop.permute.xlu0 %520
    %524 = vset.pattern.permute.xlu0 0
    %525 = vperm.xlu0 %524, %v495
    %v526 = vpop.permute.xlu0 %525
    %529 = vset.pattern.permute.xlu0 0
    %530 = vperm.xlu0 %529, %v496
    %v531 = vpop.permute.xlu0 %530
    %534 = vset.pattern.permute.xlu0 0
    %535 = vperm.xlu0 %534, %v497
    %v536 = vpop.permute.xlu0 %535
    %539 = vset.pattern.permute.xlu0 0
    %540 = vperm.xlu0 %539, %v498
    %v541 = vpop.permute.xlu0 %540
    %544 = vset.pattern.permute.xlu0 0
    %545 = vperm.xlu0 %544, %v499
    %v546 = vpop.permute.xlu0 %545
    %549 = vset.pattern.permute.xlu0 0
    %550 = vperm.xlu0 %549, %v500
    %v551 = vpop.permute.xlu0 %550
    %554 = vset.pattern.permute.xlu0 0
    %555 = vperm.xlu0 %554, %v501
    %v556 = vpop.permute.xlu0 %555
    %559 = vset.pattern.permute.xlu0 0
    %560 = vperm.xlu0 %559, %v502
    %v561 = vpop.permute.xlu0 %560
    %564 = vset.pattern.permute.xlu0 0
    %565 = vperm.xlu0 %564, %v503
    %v566 = vpop.permute.xlu0 %565
    %569 = vset.pattern.permute.xlu0 0
    %570 = vperm.xlu0 %569, %v504
    %v571 = vpop.permute.xlu0 %570
    %574 = vset.pattern.permute.xlu0 0
    %575 = vperm.xlu0 %574, %v505
    %v576 = vpop.permute.xlu0 %575
    %579 = vset.pattern.permute.xlu0 0
    %580 = vperm.xlu0 %579, %v506
    %v581 = vpop.permute.xlu0 %580
    %584 = vset.pattern.permute.xlu0 0
    %585 = vperm.xlu0 %584, %v507
    %v586 = vpop.permute.xlu0 %585
    %588 = vmatprep.subr.mxu0 %v445
    %589 = vmatpush1.msra.mxu0 %v444
    %590 = vmatprep.subr.mxu0 %v447
    %591 = vmatpush1.msra.mxu0 %v446
    %592 = vmatprep.subr.mxu0 %v449
    %593 = vmatpush1.msra.mxu0 %v448
    %594 = vmatprep.subr.mxu0 %v451
    %595 = vmatpush1.msra.mxu0 %v450
    %596 = vmatprep.subr.mxu0 %v453
    %597 = vmatpush1.msra.mxu0 %v452
    %598 = vmatprep.subr.mxu0 %v455
    %599 = vmatpush1.msra.mxu0 %v454
    %600 = vmatprep.subr.mxu0 %v457
    %601 = vmatpush1.msra.mxu0 %v456
    %602 = vmatprep.subr.mxu0 %v459
    %603 = vmatpush1.msra.mxu0 %v458
    %604 = vmatprep.subr.mxu0 %v461
    %605 = vmatpush1.msra.mxu0 %v460
    %606 = vmatprep.subr.mxu0 %v463
    %607 = vmatpush1.msra.mxu0 %v462
    %608 = vmatprep.subr.mxu0 %v465
    %609 = vmatpush1.msra.mxu0 %v464
    %610 = vmatprep.subr.mxu0 %v467
    %611 = vmatpush1.msra.mxu0 %v466
    %612 = vmatprep.subr.mxu0 %v469
    %613 = vmatpush1.msra.mxu0 %v468
    %614 = vmatprep.subr.mxu0 %v471
    %615 = vmatpush1.msra.mxu0 %v470
    %616 = vmatprep.subr.mxu0 %v473
    %617 = vmatpush1.msra.mxu0 %v472
    %618 = vmatprep.subr.mxu0 %v475
    %619 = vmatpush1.msra.mxu0 %v474
    %620 = vmatprep.subr.mxu0 0.0
    %621 = vmatpush1.msra.mxu0 0.0
    %622 = vmatprep.subr.mxu0 0.0
    %623 = vmatpush1.msra.mxu0 0.0
    %624 = vmatprep.subr.mxu0 0.0
    %625 = vmatpush1.msra.mxu0 0.0
    %626 = vmatprep.subr.mxu0 0.0
    %627 = vmatpush1.msra.mxu0 0.0
    %628 = vmatprep.subr.mxu0 0.0
    %629 = vmatpush1.msra.mxu0 0.0
    %630 = vmatprep.subr.mxu0 0.0
    %631 = vmatpush1.msra.mxu0 0.0
    %632 = vmatprep.subr.mxu0 0.0
    %633 = vmatpush1.msra.mxu0 0.0
    %634 = vmatprep.subr.mxu0 0.0
    %635 = vmatpush1.msra.mxu0 0.0
    %636 = vmatprep.subr.mxu0 0.0
    %637 = vmatpush1.msra.mxu0 0.0
    %638 = vmatprep.subr.mxu0 0.0
    %639 = vmatpush1.msra.mxu0 0.0
    %640 = vmatprep.subr.mxu0 0.0
    %641 = vmatpush1.msra.mxu0 0.0
    %642 = vmatprep.subr.mxu0 0.0
    %643 = vmatpush1.msra.mxu0 0.0
    %644 = vmatprep.subr.mxu0 0.0
    %645 = vmatpush1.msra.mxu0 0.0
    %646 = vmatprep.subr.mxu0 0.0
    %647 = vmatpush1.msra.mxu0 0.0
    %648 = vmatprep.subr.mxu0 0.0
    %649 = vmatpush1.msra.mxu0 0.0
    %650 = vmatprep.subr.mxu0 0.0
    %651 = vmatpush1.msra.mxu0 0.0
    %652 = vmatprep.mubr.f32.mxu0 0.0
    %653 = vmatmul.mubr.f32.gmra.mrb[0].mxu0 %v476
    %v654 = vpop.f32.mrb[0].mxu0
    %v655 = vadd.f32 %v511, %v654
    %v656 = vpop.f32.mrb[0].mxu0
    %v657 = vadd.f32 %v511, %v656
    %658 = vmatprep.mubr.f32.mxu0 0.0
    %659 = vmatmul.mubr.f32.gmra.mrb[0].mxu0 %v477
    %v660 = vpop.f32.mrb[0].mxu0
    %v661 = vadd.f32 %v516, %v660
    %v662 = vpop.f32.mrb[0].mxu0
    %v663 = vadd.f32 %v516, %v662
    %664 = vmatprep.mubr.f32.mxu0 0.0
    %665 = vmatmul.mubr.f32.gmra.mrb[0].mxu0 %v478
    %v666 = vpop.f32.mrb[0].mxu0
    %v667 = vadd.f32 %v521, %v666
    %v668 = vpop.f32.mrb[0].mxu0
    %v669 = vadd.f32 %v521, %v668
    %670 = vmatprep.mubr.f32.mxu0 0.0
    %671 = vmatmul.mubr.f32.gmra.mrb[0].mxu0 %v479
    %v672 = vpop.f32.mrb[0].mxu0
    %v673 = vadd.f32 %v526, %v672
    %v674 = vpop.f32.mrb[0].mxu0
    %v675 = vadd.f32 %v526, %v674
    %676 = vmatprep.mubr.f32.mxu0 0.0
    %677 = vmatmul.mubr.f32.gmra.mrb[0].mxu0 %v480
    %v678 = vpop.f32.mrb[0].mxu0
    %v679 = vadd.f32 %v531, %v678
    %v680 = vpop.f32.mrb[0].mxu0
    %v681 = vadd.f32 %v531, %v680
    %682 = vmatprep.mubr.f32.mxu0 0.0
    %683 = vmatmul.mubr.f32.gmra.mrb[0].mxu0 %v481
    %v684 = vpop.f32.mrb[0].mxu0
    %v685 = vadd.f32 %v536, %v684
    %v686 = vpop.f32.mrb[0].mxu0
    %v687 = vadd.f32 %v536, %v686
    %688 = vmatprep.mubr.f32.mxu0 0.0
    %689 = vmatmul.mubr.f32.gmra.mrb[0].mxu0 %v482
    %v690 = vpop.f32.mrb[0].mxu0
    %v691 = vadd.f32 %v541, %v690
    %v692 = vpop.f32.mrb[0].mxu0
    %v693 = vadd.f32 %v541, %v692
    %694 = vmatprep.mubr.f32.mxu0 0.0
    %695 = vmatmul.mubr.f32.gmra.mrb[0].mxu0 %v483
    %v696 = vpop.f32.mrb[0].mxu0
    %v697 = vadd.f32 %v546, %v696
    %v698 = vpop.f32.mrb[0].mxu0
    %v699 = vadd.f32 %v546, %v698
    %700 = vmatprep.mubr.f32.mxu0 0.0
    %701 = vmatmul.mubr.f32.gmra.mrb[0].mxu0 %v484
    %v702 = vpop.f32.mrb[0].mxu0
    %v703 = vadd.f32 %v551, %v702
    %v704 = vpop.f32.mrb[0].mxu0
    %v705 = vadd.f32 %v551, %v704
    %706 = vmatprep.mubr.f32.mxu0 0.0
    %707 = vmatmul.mubr.f32.gmra.mrb[0].mxu0 %v485
    %v708 = vpop.f32.mrb[0].mxu0
    %v709 = vadd.f32 %v556, %v708
    %v710 = vpop.f32.mrb[0].mxu0
    %v711 = vadd.f32 %v556, %v710
    %712 = vmatprep.mubr.f32.mxu0 0.0
    %713 = vmatmul.mubr.f32.gmra.mrb[0].mxu0 %v486
    %v714 = vpop.f32.mrb[0].mxu0
    %v715 = vadd.f32 %v561, %v714
    %v716 = vpop.f32.mrb[0].mxu0
    %v717 = vadd.f32 %v561, %v716
    %718 = vmatprep.mubr.f32.mxu0 0.0
    %719 = vmatmul.mubr.f32.gmra.mrb[0].mxu0 %v487
    %v720 = vpop.f32.mrb[0].mxu0
    %v721 = vadd.f32 %v566, %v720
    %v722 = vpop.f32.mrb[0].mxu0
    %v723 = vadd.f32 %v566, %v722
    %724 = vmatprep.mubr.f32.mxu0 0.0
    %725 = vmatmul.mubr.f32.gmra.mrb[0].mxu0 %v488
    %v726 = vpop.f32.mrb[0].mxu0
    %v727 = vadd.f32 %v571, %v726
    %v728 = vpop.f32.mrb[0].mxu0
    %v729 = vadd.f32 %v571, %v728
    %730 = vmatprep.mubr.f32.mxu0 0.0
    %731 = vmatmul.mubr.f32.gmra.mrb[0].mxu0 %v489
    %v732 = vpop.f32.mrb[0].mxu0
    %v733 = vadd.f32 %v576, %v732
    %v734 = vpop.f32.mrb[0].mxu0
    %v735 = vadd.f32 %v576, %v734
    %736 = vmatprep.mubr.f32.mxu0 0.0
    %737 = vmatmul.mubr.f32.gmra.mrb[0].mxu0 %v490
    %v738 = vpop.f32.mrb[0].mxu0
    %v739 = vadd.f32 %v581, %v738
    %v740 = vpop.f32.mrb[0].mxu0
    %v741 = vadd.f32 %v581, %v740
    %742 = vmatprep.mubr.f32.mxu0 0.0
    %743 = vmatmul.mubr.f32.gmra.mrb[0].mxu0 %v491
    %v744 = vpop.f32.mrb[0].mxu0
    %v745 = vadd.f32 %v586, %v744
    %v746 = vpop.f32.mrb[0].mxu0
    %v747 = vadd.f32 %v586, %v746
    %748 = vdwg.mxu0
    %v749 = vmax.f32 %v655, 0.0
    %v750 = vmax.f32 %v657, 0.0
    %v751 = vmax.f32 %v661, 0.0
    %v752 = vmax.f32 %v663, 0.0
    %v753 = vmax.f32 %v667, 0.0
    %v754 = vmax.f32 %v669, 0.0
    %v755 = vmax.f32 %v673, 0.0
    %v756 = vmax.f32 %v675, 0.0
    %v757 = vmax.f32 %v679, 0.0
    %v758 = vmax.f32 %v681, 0.0
    %v759 = vmax.f32 %v685, 0.0
    %v760 = vmax.f32 %v687, 0.0
    %v761 = vmax.f32 %v691, 0.0
    %v762 = vmax.f32 %v693, 0.0
    %v763 = vmax.f32 %v697, 0.0
    %v764 = vmax.f32 %v699, 0.0
    %v765 = vmax.f32 %v703, 0.0
    %v766 = vmax.f32 %v705, 0.0
    %v767 = vmax.f32 %v709, 0.0
    %v768 = vmax.f32 %v711, 0.0
    %v769 = vmax.f32 %v715, 0.0
    %v770 = vmax.f32 %v717, 0.0
    %v771 = vmax.f32 %v721, 0.0
    %v772 = vmax.f32 %v723, 0.0
    %v773 = vmax.f32 %v727, 0.0
    %v774 = vmax.f32 %v729, 0.0
    %v775 = vmax.f32 %v733, 0.0
    %v776 = vmax.f32 %v735, 0.0
    %v777 = vmax.f32 %v739, 0.0
    %v778 = vmax.f32 %v741, 0.0
    %v779 = vmax.f32 %v745, 0.0
    %v780 = vmax.f32 %v747, 0.0
    %v781 = vld [vmem:[%s5] sm:$0xff]
    %v782 = vld [vmem:[%s5 + $0x8] sm:$0xff]
    %v783 = vld [vmem:[%s5 + $0x10] sm:$0xff]
    %v784 = vld [vmem:[%s5 + $0x18] sm:$0xff]
    %v785 = vld [vmem:[%s5 + $0x20] sm:$0xff]
    %v786 = vld [vmem:[%s5 + $0x28] sm:$0xff]
    %v787 = vld [vmem:[%s5 + $0x30] sm:$0xff]
    %v788 = vld [vmem:[%s5 + $0x38] sm:$0xff]
    %v789 = vld [vmem:[%s5 + $0x40] sm:$0xff]
    %v790 = vld [vmem:[%s5 + $0x48] sm:$0xff]
    %v791 = vld [vmem:[%s5 + $0x50] sm:$0xff]
    %v792 = vld [vmem:[%s5 + $0x58] sm:$0xff]
    %v793 = vld [vmem:[%s5 + $0x60] sm:$0xff]
    %v794 = vld [vmem:[%s5 + $0x68] sm:$0xff]
    %v795 = vld [vmem:[%s5 + $0x70] sm:$0xff]
    %v796 = vld [vmem:[%s5 + $0x78] sm:$0xff]
    %v797 = vld [vmem:[%s6] sm:$0xff]
    %v798 = vld [vmem:[%s6 + $0x8] sm:$0xff]
    %v799 = vld [vmem:[%s6 + $0x10] sm:$0xff]
    %v800 = vld [vmem:[%s6 + $0x18] sm:$0xff]
    %v801 = vld [vmem:[%s6 + $0x20] sm:$0xff]
    %v802 = vld [vmem:[%s6 + $0x28] sm:$0xff]
    %v803 = vld [vmem:[%s6 + $0x30] sm:$0xff]
    %v804 = vld [vmem:[%s6 + $0x38] sm:$0xff]
    %v805 = vld [vmem:[%s6 + $0x40] sm:$0xff]
    %v806 = vld [vmem:[%s6 + $0x48] sm:$0xff]
    %v807 = vld [vmem:[%s6 + $0x50] sm:$0xff]
    %v808 = vld [vmem:[%s6 + $0x58] sm:$0xff]
    %v809 = vld [vmem:[%s6 + $0x60] sm:$0xff]
    %v810 = vld [vmem:[%s6 + $0x68] sm:$0xff]
    %v811 = vld [vmem:[%s6 + $0x70] sm:$0xff]
    %v812 = vld [vmem:[%s6 + $0x78] sm:$0xff]
    %814 = vset.pattern.permute.xlu0 0
    %815 = vperm.xlu0 %814, %v797
    %v816 = vpop.permute.xlu0 %815
    %819 = vset.pattern.permute.xlu0 0
    %820 = vperm.xlu0 %819, %v798
    %v821 = vpop.permute.xlu0 %820
    %824 = vset.pattern.permute.xlu0 0
    %825 = vperm.xlu0 %824, %v799
    %v826 = vpop.permute.xlu0 %825
    %829 = vset.pattern.permute.xlu0 0
    %830 = vperm.xlu0 %829, %v800
    %v831 = vpop.permute.xlu0 %830
    %834 = vset.pattern.permute.xlu0 0
    %835 = vperm.xlu0 %834, %v801
    %v836 = vpop.permute.xlu0 %835
    %839 = vset.pattern.permute.xlu0 0
    %840 = vperm.xlu0 %839, %v802
    %v841 = vpop.permute.xlu0 %840
    %844 = vset.pattern.permute.xlu0 0
    %845 = vperm.xlu0 %844, %v803
    %v846 = vpop.permute.xlu0 %845
    %849 = vset.pattern.permute.xlu0 0
    %850 = vperm.xlu0 %849, %v804
    %v851 = vpop.permute.xlu0 %850
    %854 = vset.pattern.permute.xlu0 0
    %855 = vperm.xlu0 %854, %v805
    %v856 = vpop.permute.xlu0 %855
    %859 = vset.pattern.permute.xlu0 0
    %860 = vperm.xlu0 %859, %v806
    %v861 = vpop.permute.xlu0 %860
    %864 = vset.pattern.permute.xlu0 0
    %865 = vperm.xlu0 %864, %v807
    %v866 = vpop.permute.xlu0 %865
    %869 = vset.pattern.permute.xlu0 0
    %870 = vperm.xlu0 %869, %v808
    %v871 = vpop.permute.xlu0 %870
    %874 = vset.pattern.permute.xlu0 0
    %875 = vperm.xlu0 %874, %v809
    %v876 = vpop.permute.xlu0 %875
    %879 = vset.pattern.permute.xlu0 0
    %880 = vperm.xlu0 %879, %v810
    %v881 = vpop.permute.xlu0 %880
    %884 = vset.pattern.permute.xlu0 0
    %885 = vperm.xlu0 %884, %v811
    %v886 = vpop.permute.xlu0 %885
    %889 = vset.pattern.permute.xlu0 0
    %890 = vperm.xlu0 %889, %v812
    %v891 = vpop.permute.xlu0 %890
    %893 = vmatprep.subr.mxu0 %v750
    %894 = vmatpush1.msra.mxu0 %v749
    %895 = vmatprep.subr.mxu0 %v752
    %896 = vmatpush1.msra.mxu0 %v751
    %897 = vmatprep.subr.mxu0 %v754
    %898 = vmatpush1.msra.mxu0 %v753
    %899 = vmatprep.subr.mxu0 %v756
    %900 = vmatpush1.msra.mxu0 %v755
    %901 = vmatprep.subr.mxu0 %v758
    %902 = vmatpush1.msra.mxu0 %v757
    %903 = vmatprep.subr.mxu0 %v760
    %904 = vmatpush1.msra.mxu0 %v759
    %905 = vmatprep.subr.mxu0 %v762
    %906 = vmatpush1.msra.mxu0 %v761
    %907 = vmatprep.subr.mxu0 %v764
    %908 = vmatpush1.msra.mxu0 %v763
    %909 = vmatprep.subr.mxu0 %v766
    %910 = vmatpush1.msra.mxu0 %v765
    %911 = vmatprep.subr.mxu0 %v768
    %912 = vmatpush1.msra.mxu0 %v767
    %913 = vmatprep.subr.mxu0 %v770
    %914 = vmatpush1.msra.mxu0 %v769
    %915 = vmatprep.subr.mxu0 %v772
    %916 = vmatpush1.msra.mxu0 %v771
    %917 = vmatprep.subr.mxu0 %v774
    %918 = vmatpush1.msra.mxu0 %v773
    %919 = vmatprep.subr.mxu0 %v776
    %920 = vmatpush1.msra.mxu0 %v775
    %921 = vmatprep.subr.mxu0 %v778
    %922 = vmatpush1.msra.mxu0 %v777
    %923 = vmatprep.subr.mxu0 %v780
    %924 = vmatpush1.msra.mxu0 %v779
    %925 = vmatprep.subr.mxu0 0.0
    %926 = vmatpush1.msra.mxu0 0.0
    %927 = vmatprep.subr.mxu0 0.0
    %928 = vmatpush1.msra.mxu0 0.0
    %929 = vmatprep.subr.mxu0 0.0
    %930 = vmatpush1.msra.mxu0 0.0
    %931 = vmatprep.subr.mxu0 0.0
    %932 = vmatpush1.msra.mxu0 0.0
    %933 = vmatprep.subr.mxu0 0.0
    %934 = vmatpush1.msra.mxu0 0.0
    %935 = vmatprep.subr.mxu0 0.0
    %936 = vmatpush1.msra.mxu0 0.0
    %937 = vmatprep.subr.mxu0 0.0
    %938 = vmatpush1.msra.mxu0 0.0
    %939 = vmatprep.subr.mxu0 0.0
    %940 = vmatpush1.msra.mxu0 0.0
    %941 = vmatprep.subr.mxu0 0.0
    %942 = vmatpush1.msra.mxu0 0.0
    %943 = vmatprep.subr.mxu0 0.0
    %944 = vmatpush1.msra.mxu0 0.0
    %945 = vmatprep.subr.mxu0 0.0
    %946 = vmatpush1.msra.mxu0 0.0
    %947 = vmatprep.subr.mxu0 0.0
    %948 = vmatpush1.msra.mxu0 0.0
    %949 = vmatprep.subr.mxu0 0.0
    %950 = vmatpush1.msra.mxu0 0.0
    %951 = vmatprep.subr.mxu0 0.0
    %952 = vmatpush1.msra.mxu0 0.0
    %953 = vmatprep.subr.mxu0 0.0
    %954 = vmatpush1.msra.mxu0 0.0
    %955 = vmatprep.subr.mxu0 0.0
    %956 = vmatpush1.msra.mxu0 0.0
    %957 = vmatprep.mubr.f32.mxu0 0.0
    %958 = vmatmul.mubr.f32.gmra.mrb[0].mxu0 %v781
    %v959 = vpop.f32.mrb[0].mxu0
    %v960 = vadd.f32 %v816, %v959
    %v961 = vpop.f32.mrb[0].mxu0
    %v962 = vadd.f32 %v816, %v961
    %963 = vmatprep.mubr.f32.mxu0 0.0
    %964 = vmatmul.mubr.f32.gmra.mrb[0].mxu0 %v782
    %v965 = vpop.f32.mrb[0].mxu0
    %v966 = vadd.f32 %v821, %v965
    %v967 = vpop.f32.mrb[0].mxu0
    %v968 = vadd.f32 %v821, %v967
    %969 = vmatprep.mubr.f32.mxu0 0.0
    %970 = vmatmul.mubr.f32.gmra.mrb[0].mxu0 %v783
    %v971 = vpop.f32.mrb[0].mxu0
    %v972 = vadd.f32 %v826, %v971
    %v973 = vpop.f32.mrb[0].mxu0
    %v974 = vadd.f32 %v826, %v973
    %975 = vmatprep.mubr.f32.mxu0 0.0
    %976 = vmatmul.mubr.f32.gmra.mrb[0].mxu0 %v784
    %v977 = vpop.f32.mrb[0].mxu0
    %v978 = vadd.f32 %v831, %v977
    %v979 = vpop.f32.mrb[0].mxu0
    %v980 = vadd.f32 %v831, %v979
    %981 = vmatprep.mubr.f32.mxu0 0.0
    %982 = vmatmul.mubr.f32.gmra.mrb[0].mxu0 %v785
    %v983 = vpop.f32.mrb[0].mxu0
    %v984 = vadd.f32 %v836, %v983
    %v985 = vpop.f32.mrb[0].mxu0
    %v986 = vadd.f32 %v836, %v985
    %987 = vmatprep.mubr.f32.mxu0 0.0
    %988 = vmatmul.mubr.f32.gmra.mrb[0].mxu0 %v786
    %v989 = vpop.f32.mrb[0].mxu0
    %v990 = vadd.f32 %v841, %v989
    %v991 = vpop.f32.mrb[0].mxu0
    %v992 = vadd.f32 %v841, %v991
    %993 = vmatprep.mubr.f32.mxu0 0.0
    %994 = vmatmul.mubr.f32.gmra.mrb[0].mxu0 %v787
    %v995 = vpop.f32.mrb[0].mxu0
    %v996 = vadd.f32 %v846, %v995
    %v997 = vpop.f32.mrb[0].mxu0
    %v998 = vadd.f32 %v846, %v997
    %999 = vmatprep.mubr.f32.mxu0 0.0
    %1000 = vmatmul.mubr.f32.gmra.mrb[0].mxu0 %v788
    %v1001 = vpop.f32.mrb[0].mxu0
    %v1002 = vadd.f32 %v851, %v1001
    %v1003 = vpop.f32.mrb[0].mxu0
    %v1004 = vadd.f32 %v851, %v1003
    %1005 = vmatprep.mubr.f32.mxu0 0.0
    %1006 = vmatmul.mubr.f32.gmra.mrb[0].mxu0 %v789
    %v1007 = vpop.f32.mrb[0].mxu0
    %v1008 = vadd.f32 %v856, %v1007
    %v1009 = vpop.f32.mrb[0].mxu0
    %v1010 = vadd.f32 %v856, %v1009
    %1011 = vmatprep.mubr.f32.mxu0 0.0
    %1012 = vmatmul.mubr.f32.gmra.mrb[0].mxu0 %v790
    %v1013 = vpop.f32.mrb[0].mxu0
    %v1014 = vadd.f32 %v861, %v1013
    %v1015 = vpop.f32.mrb[0].mxu0
    %v1016 = vadd.f32 %v861, %v1015
    %1017 = vmatprep.mubr.f32.mxu0 0.0
    %1018 = vmatmul.mubr.f32.gmra.mrb[0].mxu0 %v791
    %v1019 = vpop.f32.mrb[0].mxu0
    %v1020 = vadd.f32 %v866, %v1019
    %v1021 = vpop.f32.mrb[0].mxu0
    %v1022 = vadd.f32 %v866, %v1021
    %1023 = vmatprep.mubr.f32.mxu0 0.0
    %1024 = vmatmul.mubr.f32.gmra.mrb[0].mxu0 %v792
    %v1025 = vpop.f32.mrb[0].mxu0
    %v1026 = vadd.f32 %v871, %v1025
    %v1027 = vpop.f32.mrb[0].mxu0
    %v1028 = vadd.f32 %v871, %v1027
    %1029 = vmatprep.mubr.f32.mxu0 0.0
    %1030 = vmatmul.mubr.f32.gmra.mrb[0].mxu0 %v793
    %v1031 = vpop.f32.mrb[0].mxu0
    %v1032 = vadd.f32 %v876, %v1031
    %v1033 = vpop.f32.mrb[0].mxu0
    %v1034 = vadd.f32 %v876, %v1033
    %1035 = vmatprep.mubr.f32.mxu0 0.0
    %1036 = vmatmul.mubr.f32.gmra.mrb[0].mxu0 %v794
    %v1037 = vpop.f32.mrb[0].mxu0
    %v1038 = vadd.f32 %v881, %v1037
    %v1039 = vpop.f32.mrb[0].mxu0
    %v1040 = vadd.f32 %v881, %v1039
    %1041 = vmatprep.mubr.f32.mxu0 0.0
    %1042 = vmatmul.mubr.f32.gmra.mrb[0].mxu0 %v795
    %v1043 = vpop.f32.mrb[0].mxu0
    %v1044 = vadd.f32 %v886, %v1043
    %v1045 = vpop.f32.mrb[0].mxu0
    %v1046 = vadd.f32 %v886, %v1045
    %1047 = vmatprep.mubr.f32.mxu0 0.0
    %1048 = vmatmul.mubr.f32.gmra.mrb[0].mxu0 %v796
    %v1049 = vpop.f32.mrb[0].mxu0
    %v1050 = vadd.f32 %v891, %v1049
    %v1051 = vpop.f32.mrb[0].mxu0
    %v1052 = vadd.f32 %v891, %v1051
    %1053 = vdwg.mxu0
    %v1054 = vmax.f32 %v960, 0.0
    %v1055 = vmax.f32 %v962, 0.0
    %v1056 = vmax.f32 %v966, 0.0
    %v1057 = vmax.f32 %v968, 0.0
    %v1058 = vmax.f32 %v972, 0.0
    %v1059 = vmax.f32 %v974, 0.0
    %v1060 = vmax.f32 %v978, 0.0
    %v1061 = vmax.f32 %v980, 0.0
    %v1062 = vmax.f32 %v984, 0.0
    %v1063 = vmax.f32 %v986, 0.0
    %v1064 = vmax.f32 %v990, 0.0
    %v1065 = vmax.f32 %v992, 0.0
    %v1066 = vmax.f32 %v996, 0.0
    %v1067 = vmax.f32 %v998, 0.0
    %v1068 = vmax.f32 %v1002, 0.0
    %v1069 = vmax.f32 %v1004, 0.0
    %v1070 = vmax.f32 %v1008, 0.0
    %v1071 = vmax.f32 %v1010, 0.0
    %v1072 = vmax.f32 %v1014, 0.0
    %v1073 = vmax.f32 %v1016, 0.0
    %v1074 = vmax.f32 %v1020, 0.0
    %v1075 = vmax.f32 %v1022, 0.0
    %v1076 = vmax.f32 %v1026, 0.0
    %v1077 = vmax.f32 %v1028, 0.0
    %v1078 = vmax.f32 %v1032, 0.0
    %v1079 = vmax.f32 %v1034, 0.0
    %v1080 = vmax.f32 %v1038, 0.0
    %v1081 = vmax.f32 %v1040, 0.0
    %v1082 = vmax.f32 %v1044, 0.0
    %v1083 = vmax.f32 %v1046, 0.0
    %v1084 = vmax.f32 %v1050, 0.0
    %v1085 = vmax.f32 %v1052, 0.0
    %v1086 = vld [vmem:[%s7] sm:$0xff]
    %v1087 = vld [vmem:[%s7 + $0x8] sm:$0xff]
    %v1088 = vld [vmem:[%s7 + $0x10] sm:$0xff]
    %v1089 = vld [vmem:[%s7 + $0x18] sm:$0xff]
    %v1090 = vld [vmem:[%s7 + $0x20] sm:$0xff]
    %v1091 = vld [vmem:[%s7 + $0x28] sm:$0xff]
    %v1092 = vld [vmem:[%s7 + $0x30] sm:$0xff]
    %v1093 = vld [vmem:[%s7 + $0x38] sm:$0xff]
    %v1094 = vld [vmem:[%s7 + $0x40] sm:$0xff]
    %v1095 = vld [vmem:[%s7 + $0x48] sm:$0xff]
    %v1096 = vld [vmem:[%s7 + $0x50] sm:$0xff]
    %v1097 = vld [vmem:[%s7 + $0x58] sm:$0xff]
    %v1098 = vld [vmem:[%s7 + $0x60] sm:$0xff]
    %v1099 = vld [vmem:[%s7 + $0x68] sm:$0xff]
    %v1100 = vld [vmem:[%s7 + $0x70] sm:$0xff]
    %v1101 = vld [vmem:[%s7 + $0x78] sm:$0xff]
    %1103 = vset.pattern.permute.xlu0 0
    %1104 = vperm.xlu0 %1103, %v1086
    %v1105 = vpop.permute.xlu0 %1104
    %1108 = vset.pattern.permute.xlu0 0
    %1109 = vperm.xlu0 %1108, %v1087
    %v1110 = vpop.permute.xlu0 %1109
    %1113 = vset.pattern.permute.xlu0 0
    %1114 = vperm.xlu0 %1113, %v1088
    %v1115 = vpop.permute.xlu0 %1114
    %1118 = vset.pattern.permute.xlu0 0
    %1119 = vperm.xlu0 %1118, %v1089
    %v1120 = vpop.permute.xlu0 %1119
    %1123 = vset.pattern.permute.xlu0 0
    %1124 = vperm.xlu0 %1123, %v1090
    %v1125 = vpop.permute.xlu0 %1124
    %1128 = vset.pattern.permute.xlu0 0
    %1129 = vperm.xlu0 %1128, %v1091
    %v1130 = vpop.permute.xlu0 %1129
    %1133 = vset.pattern.permute.xlu0 0
    %1134 = vperm.xlu0 %1133, %v1092
    %v1135 = vpop.permute.xlu0 %1134
    %1138 = vset.pattern.permute.xlu0 0
    %1139 = vperm.xlu0 %1138, %v1093
    %v1140 = vpop.permute.xlu0 %1139
    %1143 = vset.pattern.permute.xlu0 0
    %1144 = vperm.xlu0 %1143, %v1094
    %v1145 = vpop.permute.xlu0 %1144
    %1148 = vset.pattern.permute.xlu0 0
    %1149 = vperm.xlu0 %1148, %v1095
    %v1150 = vpop.permute.xlu0 %1149
    %1153 = vset.pattern.permute.xlu0 0
    %1154 = vperm.xlu0 %1153, %v1096
    %v1155 = vpop.permute.xlu0 %1154
    %1158 = vset.pattern.permute.xlu0 0
    %1159 = vperm.xlu0 %1158, %v1097
    %v1160 = vpop.permute.xlu0 %1159
    %1163 = vset.pattern.permute.xlu0 0
    %1164 = vperm.xlu0 %1163, %v1098
    %v1165 = vpop.permute.xlu0 %1164
    %1168 = vset.pattern.permute.xlu0 0
    %1169 = vperm.xlu0 %1168, %v1099
    %v1170 = vpop.permute.xlu0 %1169
    %1173 = vset.pattern.permute.xlu0 0
    %1174 = vperm.xlu0 %1173, %v1100
    %v1175 = vpop.permute.xlu0 %1174
    %1178 = vset.pattern.permute.xlu0 0
    %1179 = vperm.xlu0 %1178, %v1101
    %v1180 = vpop.permute.xlu0 %1179
    %v1182 = vmul.f32 %v1054, %v1105
    %v1183 = vmul.f32 %v1055, %v1105
    %v1184 = vmul.f32 %v1056, %v1110
    %v1185 = vmul.f32 %v1057, %v1110
    %v1186 = vmul.f32 %v1058, %v1115
    %v1187 = vmul.f32 %v1059, %v1115
    %v1188 = vmul.f32 %v1060, %v1120
    %v1189 = vmul.f32 %v1061, %v1120
    %v1190 = vmul.f32 %v1062, %v1125
    %v1191 = vmul.f32 %v1063, %v1125
    %v1192 = vmul.f32 %v1064, %v1130
    %v1193 = vmul.f32 %v1065, %v1130
    %v1194 = vmul.f32 %v1066, %v1135
    %v1195 = vmul.f32 %v1067, %v1135
    %v1196 = vmul.f32 %v1068, %v1140
    %v1197 = vmul.f32 %v1069, %v1140
    %v1198 = vmul.f32 %v1070, %v1145
    %v1199 = vmul.f32 %v1071, %v1145
    %v1200 = vmul.f32 %v1072, %v1150
    %v1201 = vmul.f32 %v1073, %v1150
    %v1202 = vmul.f32 %v1074, %v1155
    %v1203 = vmul.f32 %v1075, %v1155
    %v1204 = vmul.f32 %v1076, %v1160
    %v1205 = vmul.f32 %v1077, %v1160
    %v1206 = vmul.f32 %v1078, %v1165
    %v1207 = vmul.f32 %v1079, %v1165
    %v1208 = vmul.f32 %v1080, %v1170
    %v1209 = vmul.f32 %v1081, %v1170
    %v1210 = vmul.f32 %v1082, %v1175
    %v1211 = vmul.f32 %v1083, %v1175
    %v1212 = vmul.f32 %v1084, %v1180
    %v1213 = vmul.f32 %v1085, %v1180
    %v1214 = vadd.f32 %v1182, %v1184
    %v1215 = vadd.f32 %v1214, %v1186
    %v1216 = vadd.f32 %v1215, %v1188
    %v1217 = vadd.f32 %v1216, %v1190
    %v1218 = vadd.f32 %v1217, %v1192
    %v1219 = vadd.f32 %v1218, %v1194
    %v1220 = vadd.f32 %v1219, %v1196
    %v1221 = vadd.f32 %v1220, %v1198
    %v1222 = vadd.f32 %v1221, %v1200
    %v1223 = vadd.f32 %v1222, %v1202
    %v1224 = vadd.f32 %v1223, %v1204
    %v1225 = vadd.f32 %v1224, %v1206
    %v1226 = vadd.f32 %v1225, %v1208
    %v1227 = vadd.f32 %v1226, %v1210
    %v1228 = vadd.f32 %v1227, %v1212
    %v1229 = vrot.slane %v1228, 4
    %v1230 = vadd.f32 %v1228, %v1229
    %v1231 = vrot.slane %v1230, 2
    %v1232 = vadd.f32 %v1230, %v1231
    %v1233 = vrot.slane %v1232, 1
    %v1234 = vadd.f32 %v1232, %v1233
    %v1235 = vadd.f32 %v1183, %v1185
    %v1236 = vadd.f32 %v1235, %v1187
    %v1237 = vadd.f32 %v1236, %v1189
    %v1238 = vadd.f32 %v1237, %v1191
    %v1239 = vadd.f32 %v1238, %v1193
    %v1240 = vadd.f32 %v1239, %v1195
    %v1241 = vadd.f32 %v1240, %v1197
    %v1242 = vadd.f32 %v1241, %v1199
    %v1243 = vadd.f32 %v1242, %v1201
    %v1244 = vadd.f32 %v1243, %v1203
    %v1245 = vadd.f32 %v1244, %v1205
    %v1246 = vadd.f32 %v1245, %v1207
    %v1247 = vadd.f32 %v1246, %v1209
    %v1248 = vadd.f32 %v1247, %v1211
    %v1249 = vadd.f32 %v1248, %v1213
    %v1250 = vrot.slane %v1249, 4
    %v1251 = vadd.f32 %v1249, %v1250
    %v1252 = vrot.slane %v1251, 2
    %v1253 = vadd.f32 %v1251, %v1252
    %v1254 = vrot.slane %v1253, 1
    %v1255 = vadd.f32 %v1253, %v1254
    %v1256 = vld [vmem:[#allocation2] sm:$0x1]
    %1258 = vset.pattern.permute.xlu0 0
    %1259 = vperm.xlu0 %1258, %v1256
    %v1260 = vpop.permute.xlu0 %1259
    %v1262 = vlaneseq
    %v1263 = vshrl.u32 %v1262, 7
    %v1264 = vsub.s32 0, %v1263
    %v1265 = vrot.slane %v1260, %v1264
    %v1266 = vadd.f32 %v1234, %v1265
    %v1267 = vadd.f32 %v1255, %v1265
    %v1270 = vcombine.low %v1266, %v1267
    %v1272 = vunpack.c.l.s4 1966171168
    %v1273 = vunpack.c.0.s8 %v1272
    %v1274 = vlaneseq
    %v1275 = vshrl.u32 %v1274, 7
    %v1276 = vsub.s32 %v1273, %v1275
    %v1277 = vrot.slane %v1270, %v1276
    %v1279 = vunpack.c.l.s4 1966171168
    %v1280 = vunpack.c.0.s8 %v1279
    %v1281 = vlaneseq
    %v1282 = vshrl.u32 %v1281, 7
    %v1283 = vsub.s32 %v1280, %v1282
    %v1284 = vrot.slane %v1277, %v1283
    %v1286 = vlaneseq
    %vm1287 = vcmp.ge.s32.totalorder %v1286, 0
    %vm1288 = vcmp.lt.s32.totalorder %v1286, 256
    %vm1289 = vmand %vm1287, %vm1288
    %1290 = vst.msk [vmem:[#allocation3] sm:$0x3] %vm1289, %v1284
    // Predicated region
    $region38: #{tpu_custom_call.1} parent=1 // pred_check
      _
    $region39: #{tpu_custom_call.1} parent=1 // pred_check_branch
      %1292 = sbr.rel (0) target = $region41
    $region40: #{tpu_custom_call.1} parent=1 // pred_region
      %s1294 = ssub.s32 32, 32
      %1295 = vsyncadd [#allocation4], %s1294
      %s1297 = sshll.u32 [#allocation3], 4
      %s1298 = int_to_ptr.vmem [resolvable:$true] %s1297
      %1300 = dma.vmem_to_hbm [thread:$0]  %s1298, 32, %s9, [#allocation4]
    $region41: #{tpu_custom_call.1} parent=1 // pred_fallthru
      _
    // Predicated region
    $region42: #{tpu_custom_call.1} parent=1 // pred_check
      _
    $region43: #{tpu_custom_call.1} parent=1 // pred_check_branch
      %1302 = sbr.rel (0) target = $region45
    $region44: #{tpu_custom_call.1} parent=1 // pred_region
      %1303 = dma.done [#allocation4], 32
    $region45: #{tpu_custom_call.1} parent=1 // pred_fallthru
      _
    %1304 = vsyncpa [#allocation4], 1

</llo_original>
